<compile_context>
chip_gen: v5e
topology: v5e:2x2
jax: 0.10.0
libtpu: 0.0.40
codegen_flags: <defaults>
</compile_context>

<pallas_src>
import math

import jax
import jax.numpy as jnp
from jax.experimental import pallas as pl
from jax.experimental.pallas import tpu as pltpu


def _pos_enc_kernel(x_ref, pe_ref, o_ref):
    # x_ref: (1, TILE_S, D)   pe_ref: (1, 1, D) -> broadcast-add over the seq axis.
    o_ref[...] = x_ref[...] + pe_ref[...].astype(x_ref.dtype)
    # TODO(synk): nn.Dropout(p=0.1) is identity at inference; training-mode dropout
    #             would go here (pltpu.prng_seed + pltpu.prng_random_bits + where).


def make_pe_buffer(d_model, max_seq_len):
    """Builds the same `pe` buffer as the PyTorch module: [max_seq_len, 1, d_model]."""
    position = jnp.arange(max_seq_len, dtype=jnp.float32)[:, None]
    div_term = jnp.exp(
        jnp.arange(0, d_model, 2, dtype=jnp.float32) * (-math.log(10000.0) / d_model)
    )
    pe = jnp.zeros((max_seq_len, 1, d_model), jnp.float32)
    pe = pe.at[:, 0, 0::2].set(jnp.sin(position * div_term))
    pe = pe.at[:, 0, 1::2].set(jnp.cos(position * div_term))
    return pe


def _choose_seq_tile(S, D, itemsize):
    """Largest multiple-of-8 divisor of S whose (tile, D) block is <= ~2 MiB."""
    target_rows = max(8, (2 * 1024 * 1024) // max(1, D * itemsize))
    tile = min(S, target_rows)
    tile = (tile // 8) * 8
    while tile >= 8 and S % tile != 0:
        tile -= 8
    if tile < 8 or S % tile != 0:
        tile = S  # fall back to the full (unsplit) sequence extent
    return tile


def positional_encoder_forward(x, pe):
    """x: [B, S, D] (batch_first=True). Returns x + pe[:B] (dropout = identity, eval)."""
    B, S, D = x.shape
    max_seq_len, _, pe_d = pe.shape
    if pe_d != D:
        raise ValueError(f"d_model mismatch: x has {D}, pe has {pe_d}")
    if B > max_seq_len:
        # Same failure mode the PyTorch buffer slice would hit; fail loudly.
        raise ValueError(f"batch size {B} exceeds max_seq_len {max_seq_len}")
    # TODO(synk): if D is ever not a multiple of 128, pad it on the host so the
    #             output stays lane-dense (avoids masked vst.msk partial stores).

    itemsize = jnp.dtype(x.dtype).itemsize
    tile_s = _choose_seq_tile(S, D, itemsize)
    grid = (B, S // tile_s)

    bytes_x = B * S * D * itemsize
    cost = pl.CostEstimate(
        flops=B * S * D,
        transcendentals=0,
        bytes_accessed=2 * bytes_x + B * D * pe.dtype.itemsize,
    )

    return pl.pallas_call(
        _pos_enc_kernel,
        grid=grid,
        in_specs=[
            # x: one batch row, one sequence tile, full d_model on the lane axis.
            pl.BlockSpec((1, tile_s, D), lambda b, s: (b, s, 0)),
            # pe[:B] — indexed by batch (faithful to the PyTorch quirk), broadcast over
            # seq.  Block index depends only on b, so Pallas skips the DMA while the
            # inner (seq) grid axis advances: pe is fetched once per batch row.
            pl.BlockSpec((1, 1, D), lambda b, s: (b, 0, 0)),
        ],
        out_specs=pl.BlockSpec((1, tile_s, D), lambda b, s: (b, s, 0)),
        out_shape=jax.ShapeDtypeStruct((B, S, D), x.dtype),
        compiler_params=pltpu.CompilerParams(
            dimension_semantics=("parallel", "arbitrary")
        ),
        cost_estimate=cost,
    )(x, pe)


if __name__ == "__main__":
    # Small shapes consistent with the module: batch=2, seq=8, d_model=128 (lane-dense).
    batch, seq_len, d_model, max_seq_len = 2, 8, 128, 32

    key = jax.random.PRNGKey(0)
    x = jax.random.normal(key, (batch, seq_len, d_model), jnp.float32)
    pe = make_pe_buffer(d_model, max_seq_len)

    out = positional_encoder_forward(x, pe)
    out = jax.block_until_ready(out)

    # Pure-JAX reference — same quirky broadcast as the PyTorch forward.
    ref = x + pe[:batch]
    assert out.shape == (batch, seq_len, d_model), out.shape
    assert out.dtype == x.dtype, out.dtype
    assert jnp.all(jnp.isfinite(out))
    assert jnp.allclose(out, ref, atol=1e-6, rtol=1e-6)

    # Also exercise a bf16 activation stream (output dtype must follow input dtype).
    x_bf16 = x.astype(jnp.bfloat16)
    out_bf16 = jax.block_until_ready(positional_encoder_forward(x_bf16, pe))
    ref_bf16 = x_bf16 + pe[:batch].astype(jnp.bfloat16)
    assert out_bf16.dtype == jnp.bfloat16
    assert jnp.allclose(
        out_bf16.astype(jnp.float32), ref_bf16.astype(jnp.float32), atol=2e-2, rtol=2e-2
    )

    print("KERNEL_OK")
</pallas_src>

<mosaic_0001>
module attributes {stable_mosaic.version = 11 : i64} {
  func.func @_pos_enc_kernel(%arg0: i32, %arg1: i32, %arg2: memref<1x8x128xf32, #tpu.memory_space<vmem>>, %arg3: memref<1x1x128xf32, #tpu.memory_space<vmem>>, %arg4: memref<1x8x128xf32, #tpu.memory_space<vmem>>) attributes {dimension_semantics = [#tpu.dimension_semantics<parallel>, #tpu.dimension_semantics<arbitrary>], iteration_bounds = array<i64: 2, 1>, scalar_prefetch = 0 : i64, scratch_operands = 0 : i64, tpu.core_type = #tpu.core_type<tc>, window_params = [{transform_indices = @transform_0, window_bounds = array<i64: 1, 8, 128>}, {transform_indices = @transform_1, window_bounds = array<i64: 1, 1, 128>}, {transform_indices = @transform_2, window_bounds = array<i64: 1, 8, 128>}]} {
    %c0 = arith.constant 0 : index
    %c0_0 = arith.constant 0 : index
    %c0_1 = arith.constant 0 : index
    %0 = vector.load %arg2[%c0, %c0_0, %c0_1] : memref<1x8x128xf32, #tpu.memory_space<vmem>>, vector<1x8x128xf32>
    %c0_2 = arith.constant 0 : index
    %c0_3 = arith.constant 0 : index
    %c0_4 = arith.constant 0 : index
    %1 = vector.load %arg3[%c0_2, %c0_3, %c0_4] : memref<1x1x128xf32, #tpu.memory_space<vmem>>, vector<1x1x128xf32>
    %2 = vector.broadcast %1 : vector<1x1x128xf32> to vector<1x8x128xf32>
    %3 = arith.addf %0, %2 : vector<1x8x128xf32>
    %c0_5 = arith.constant 0 : index
    %c0_6 = arith.constant 0 : index
    %c0_7 = arith.constant 0 : index
    %4 = vector.load %arg4[%c0_5, %c0_6, %c0_7] : memref<1x8x128xf32, #tpu.memory_space<vmem>>, vector<1x8x128xf32>
    tpu.vector_store %arg4[%c0_5, %c0_6, %c0_7], %3 {strides = array<i32>} : memref<1x8x128xf32, #tpu.memory_space<vmem>>, vector<1x8x128xf32>,
    return
  }
  func.func @transform_0(%arg0: i32, %arg1: i32) -> (i32, i32, i32) {
    %c0_i32 = arith.constant 0 : i32
    %c0_i32_0 = arith.constant 0 : i32
    return %arg0, %arg1, %c0_i32 : i32, i32, i32
  }
  func.func @transform_1(%arg0: i32, %arg1: i32) -> (i32, i32, i32) {
    %c0_i32 = arith.constant 0 : i32
    %c0_i32_0 = arith.constant 0 : i32
    %c0_i32_1 = arith.constant 0 : i32
    return %arg0, %c0_i32, %c0_i32_0 : i32, i32, i32
  }
  func.func @transform_2(%arg0: i32, %arg1: i32) -> (i32, i32, i32) {
    %c0_i32 = arith.constant 0 : i32
    %c0_i32_0 = arith.constant 0 : i32
    return %arg0, %arg1, %c0_i32 : i32, i32, i32
  }
}

</mosaic_0001>

<llo_original>
// kernel: tpu_custom_call.1
$region0: #{tpu_custom_call.1}
  #allocation0 [shape = 'u32[]', space=smem, size = 0x4, offset = 0x4, fixed_abs, tag = 'smem constant byte address 0x4 - core index']
  #allocation1 [shape = 'u32[72,128]{1,0:T(1,128)}', space=vmem, size = 0x9000, scoped, tag = 'internal scratch']
  %s0 = inlined_call_operand.hbm [shape: f32[2,8,128], index: 0, kind: input, shape index: {}]
  %s1 = inlined_call_operand.hbm [shape: f32[32,1,128], index: 1, kind: input, shape index: {}]
  %s2 = inlined_call_operand.hbm [shape: f32[2,8,128], index: 2, kind: output, shape index: {}]
  %s3 = sld [smem:[#allocation0]]
  $region49: #{tpu_custom_call.1} parent=0
    _
  %s5 = ssub.s32 1, %s3
  %s6 = scalar_select 0, %s5, %s3
  $region1: #{tpu_custom_call.1} parent=0
    #allocation2 [shape = 'u8[8192]{0}', space=vmem, size = 0x2000, scoped, tag = 'input window, operand 0']
    #allocation3 [shape = 's32[2]{0}', space=sflag, size = 0x8, scoped, tag = 'scoped memory for tpu_custom_call.1']
    #allocation4 [shape = 's32[2]{0}', space=sflag, size = 0x8, scoped, tag = 'scoped memory for tpu_custom_call.1']
    #allocation5 [shape = 'u8[1024]{0}', space=vmem, size = 0x400, scoped, tag = 'input window, operand 1']
    #allocation6 [shape = 's32[2]{0}', space=sflag, size = 0x8, scoped, tag = 'scoped memory for tpu_custom_call.1']
    #allocation7 [shape = 'u8[8192]{0}', space=vmem, size = 0x2000, scoped, tag = 'output window, operand 0']
    %7 = vsyncpa [#allocation3], 0
    %s8 = scalar_lea.sflag [#allocation3], 1
    %9 = vsyncpa %s8, 0
    %10 = vsyncpa [#allocation6], 0
    %s11 = scalar_lea.sflag [#allocation6], 1
    %12 = vsyncpa %s11, 0
    %13 = vsyncpa [#allocation4], 0
    %s14 = scalar_lea.sflag [#allocation4], 1
    %15 = vsyncpa %s14, 0
    loop: start=0, step=1, limit=4
    $region2: #{tpu_custom_call.1} parent=1 // loop_pre_header
      _
    $region3: #{tpu_custom_call.1} parent=1 // loop_header
      %s17 = sphi 0, %s21
      %p18 = scmp.ge.s32.totalorder %s17, 4
      %s24 = sphi 0, %s36
      %s25 = sphi 0, %s32
      %s26 = sphi 0, %s24
      %s27 = sphi 0, %s25
      %s28 = sphi 0, %s26
      %s29 = sphi 0, %s27
      %s41 = sphi 0, %s43
      %s44 = sphi 0, %s41
      %s45 = sphi 0, %s44
      %s61 = sphi 0, %s45
      %s67 = sphi 0, %s69
      %s70 = sphi 0, %s67
      %s71 = sphi 0, %s70
      %s87 = sphi 0, %s71
      %s95 = sphi 0, %s97
      %s98 = sphi 0, %s95
      %s99 = sphi 0, %s98
      %s115 = sphi 0, %s99
    $region4: #{tpu_custom_call.1} parent=1 // loop_header_branch
      %20 = sbr.rel (%p18) target = $region8
    $region5: #{tpu_custom_call.1} parent=1 // loop_body
      %s22 = ssub.s32 %s17, 1
      %s23 = ssub.s32 %s17, 2
      %s30 = sadd.s32 1, %s25
      %p31 = scmp.ge.s32.totalorder %s30, 1
      %s32 = scalar_select %p31, 0, %s30
      %s33 = sadd.s32 1, %s24
      %s34 = scalar_select %p31, %s33, %s24
      %p35 = scmp.ge.s32.totalorder %s34, 2
      %s36 = scalar_select %p35, 0, %s34
      %s37 = ssub.s32 %s24, %s36
      %s38 = ssub.s32 %s25, %s32
      %s39 = sor.u32 %s37, %s38
      %p40 = scmp.eq.s32.totalorder %s39, 0
      %s42 = sadd.s32 %s41, 1
      %s43 = scalar_select %p40, %s41, %s42
      %p46 = pneg %p40
      %p47 = scmp.eq.s32.totalorder %s17, 1
      %p48 = por %p46, %p47
      %p49 = scmp.ne.s32.totalorder %s41, %s44
      %p50 = scmp.eq.s32.totalorder %s17, 0
      %p51 = por %p49, %p50
      %p52 = scmp.ne.s32.totalorder %s41, %s44
      %p53 = scmp.eq.s32.totalorder %s22, 1
      %p54 = por %p52, %p53
      %p55 = scmp.ne.s32.totalorder %s44, %s45
      %p56 = scmp.eq.s32.totalorder %s22, 0
      %p57 = por %p55, %p56
      %p58 = scmp.ne.s32.totalorder %s44, %s45
      %p59 = scmp.eq.s32.totalorder %s23, 1
      %p60 = por %p58, %p59
      %p62 = scmp.ne.s32.totalorder %s45, %s61
      %p63 = scmp.eq.s32.totalorder %s23, 0
      %p64 = por %p62, %p63
      %s65 = ssub.s32 %s24, %s36
      %p66 = scmp.eq.s32.totalorder %s65, 0
      %s68 = sadd.s32 %s67, 1
      %s69 = scalar_select %p66, %s67, %s68
      %p72 = pneg %p66
      %p73 = scmp.eq.s32.totalorder %s17, 1
      %p74 = por %p72, %p73
      %p75 = scmp.ne.s32.totalorder %s67, %s70
      %p76 = scmp.eq.s32.totalorder %s17, 0
      %p77 = por %p75, %p76
      %p78 = scmp.ne.s32.totalorder %s67, %s70
      %p79 = scmp.eq.s32.totalorder %s22, 1
      %p80 = por %p78, %p79
      %p81 = scmp.ne.s32.totalorder %s70, %s71
      %p82 = scmp.eq.s32.totalorder %s22, 0
      %p83 = por %p81, %p82
      %p84 = scmp.ne.s32.totalorder %s70, %s71
      %p85 = scmp.eq.s32.totalorder %s23, 1
      %p86 = por %p84, %p85
      %p88 = scmp.ne.s32.totalorder %s71, %s87
      %p89 = scmp.eq.s32.totalorder %s23, 0
      %p90 = por %p88, %p89
      %s91 = ssub.s32 %s24, %s36
      %s92 = ssub.s32 %s25, %s32
      %s93 = sor.u32 %s91, %s92
      %p94 = scmp.eq.s32.totalorder %s93, 0
      %s96 = sadd.s32 %s95, 1
      %s97 = scalar_select %p94, %s95, %s96
      %p100 = pneg %p94
      %p101 = scmp.eq.s32.totalorder %s17, 1
      %p102 = por %p100, %p101
      %p103 = scmp.ne.s32.totalorder %s95, %s98
      %p104 = scmp.eq.s32.totalorder %s17, 0
      %p105 = por %p103, %p104
      %p106 = scmp.ne.s32.totalorder %s95, %s98
      %p107 = scmp.eq.s32.totalorder %s22, 1
      %p108 = por %p106, %p107
      %p109 = scmp.ne.s32.totalorder %s98, %s99
      %p110 = scmp.eq.s32.totalorder %s22, 0
      %p111 = por %p109, %p110
      %p112 = scmp.ne.s32.totalorder %s98, %s99
      %p113 = scmp.eq.s32.totalorder %s23, 1
      %p114 = por %p112, %p113
      %p116 = scmp.ne.s32.totalorder %s99, %s115
      %p117 = scmp.eq.s32.totalorder %s23, 0
      %p118 = por %p116, %p117
      %p119 = scmp.le.s32.totalorder 1, %s17
      %p120 = scmp.lt.s32.totalorder %s17, 3
      %p121 = pnand %p119, %p120
      %p122 = pneg %p121
      // Predicated region
      $region9: #{tpu_custom_call.1} parent=5 // pred_check
        _
      $region10: #{tpu_custom_call.1} parent=5 // pred_check_branch
        %124 = sbr.rel (%p121) target = $region12
      $region11: #{tpu_custom_call.1} parent=5 // pred_region
        %s125 = ssub.s32 %s17, 1
      $region12: #{tpu_custom_call.1} parent=5 // pred_fallthru
        _
      %p126 = scmp.lt.s32.totalorder %s17, 2
      // Predicated region
      $region13: #{tpu_custom_call.1} parent=5 // pred_check
        %p127 = pneg %p126
      $region14: #{tpu_custom_call.1} parent=5 // pred_check_branch
        %129 = sbr.rel (%p127) target = $region16
      $region15: #{tpu_custom_call.1} parent=5 // pred_region
        // Predicated region
        $region17: #{tpu_custom_call.1} parent=15 // pred_check
          %p130 = pneg %p51
        $region18: #{tpu_custom_call.1} parent=15 // pred_check_branch
          %132 = sbr.rel (%p130) target = $region20
        $region19: #{tpu_custom_call.1} parent=15 // pred_region
          %s133 = sand.u32 %s41, 1
          %s134 = scalar_lea.sflag [#allocation3], %s133
          %s135 = sand.u32 %s41, 1
          %s136 = smul.addr %s135, 8
          %s137 = scalar_lea.vmem [#allocation2], %s136
          %139 = vsyncadd %s134, 0
          %s140 = sadd.s32 %s25, %s24
          %s141 = smul.addr %s140, 8
          %s142 = scalar_lea.hbm %s0, %s141
          %s144 = sshll.u32 %s142, 4
          %s145 = int_to_ptr.hbm [resolvable:$true] %s144
          %s146 = sshll.u32 %s137, 4
          %s147 = int_to_ptr.vmem [resolvable:$true] %s146
          %149 = dma.hbm_to_vmem [thread:$0]  %s145, 128, %s147, %s134
        $region20: #{tpu_custom_call.1} parent=15 // pred_fallthru
          _
        // Predicated region
        $region21: #{tpu_custom_call.1} parent=15 // pred_check
          %p150 = pneg %p77
        $region22: #{tpu_custom_call.1} parent=15 // pred_check_branch
          %152 = sbr.rel (%p150) target = $region24
        $region23: #{tpu_custom_call.1} parent=15 // pred_region
          %s153 = sand.u32 %s67, 1
          %s154 = scalar_lea.sflag [#allocation6], %s153
          %s155 = sand.u32 %s67, 1
          %s156 = scalar_lea.vmem [#allocation5], %s155
          %158 = vsyncadd %s154, 0
          %s159 = scalar_lea.hbm %s1, %s24
          %s161 = sshll.u32 %s159, 4
          %s162 = int_to_ptr.hbm [resolvable:$true] %s161
          %s163 = sshll.u32 %s156, 4
          %s164 = int_to_ptr.vmem [resolvable:$true] %s163
          %166 = dma.hbm_to_vmem [thread:$0]  %s162, 16, %s164, %s154
        $region24: #{tpu_custom_call.1} parent=15 // pred_fallthru
          _
      $region16: #{tpu_custom_call.1} parent=5 // pred_fallthru
        _
      %p167 = scmp.le.s32.totalorder 1, %s17
      %p168 = scmp.lt.s32.totalorder %s17, 3
      %p169 = pnand %p167, %p168
      %p170 = pneg %p169
      // Predicated region
      $region25: #{tpu_custom_call.1} parent=5 // pred_check
        _
      $region26: #{tpu_custom_call.1} parent=5 // pred_check_branch
        %172 = sbr.rel (%p169) target = $region28
      $region27: #{tpu_custom_call.1} parent=5 // pred_region
        %s173 = ssub.s32 %s17, 1
        %s174 = sand.u32 %s44, 1
        %s175 = scalar_lea.sflag [#allocation3], %s174
        %s176 = sand.u32 %s44, 1
        %s177 = smul.addr %s176, 8
        %s178 = scalar_lea.vmem [#allocation2], %s177
        // Predicated region
        $region29: #{tpu_custom_call.1} parent=27 // pred_check
          %p179 = pneg %p57
        $region30: #{tpu_custom_call.1} parent=27 // pred_check_branch
          %181 = sbr.rel (%p179) target = $region32
        $region31: #{tpu_custom_call.1} parent=27 // pred_region
          %183 = dma.done %s175, 128
        $region32: #{tpu_custom_call.1} parent=27 // pred_fallthru
          _
        %s184 = sand.u32 %s70, 1
        %s185 = scalar_lea.sflag [#allocation6], %s184
        %s186 = sand.u32 %s70, 1
        %s187 = scalar_lea.vmem [#allocation5], %s186
        // Predicated region
        $region33: #{tpu_custom_call.1} parent=27 // pred_check
          %p188 = pneg %p83
        $region34: #{tpu_custom_call.1} parent=27 // pred_check_branch
          %190 = sbr.rel (%p188) target = $region36
        $region35: #{tpu_custom_call.1} parent=27 // pred_region
          %192 = dma.done %s185, 16
        $region36: #{tpu_custom_call.1} parent=27 // pred_fallthru
          _
        %s193 = sand.u32 %s44, 1
        %s194 = scalar_lea.sflag [#allocation3], %s193
        %s195 = sand.u32 %s44, 1
        %s196 = smul.addr %s195, 8
        %s197 = scalar_lea.vmem [#allocation2], %s196
        %p198 = pneg %p57
        %p199 = pneg %p54
        %s200 = sand.u32 %s70, 1
        %s201 = scalar_lea.sflag [#allocation6], %s200
        %s202 = sand.u32 %s70, 1
        %s203 = scalar_lea.vmem [#allocation5], %s202
        %p204 = pneg %p83
        %p205 = pneg %p80
        %p206 = pneg %p111
        %p207 = pneg %p108
        %s208 = sand.u32 %s98, 1
        %s209 = scalar_lea.sflag [#allocation4], %s208
        %s210 = sand.u32 %s98, 1
        %s211 = smul.addr %s210, 8
        %s212 = scalar_lea.vmem [#allocation7], %s211
        %v213 = vld [vmem:[%s178] sm:$0xff]
        %v214 = vld [vmem:[%s187] sm:$0x1]
        %v216 = vperm.slane %v214, 0
        %v218 = vadd.f32 %v213, %v216
        %219 = vst [vmem:[%s212] sm:$0xff] %v218
        %s220 = sand.u32 %s98, 1
        %s221 = scalar_lea.sflag [#allocation4], %s220
        %s222 = sand.u32 %s98, 1
        %s223 = smul.addr %s222, 8
        %s224 = scalar_lea.vmem [#allocation7], %s223
        // Predicated region
        $region37: #{tpu_custom_call.1} parent=27 // pred_check
          %p225 = pneg %p108
        $region38: #{tpu_custom_call.1} parent=27 // pred_check_branch
          %227 = sbr.rel (%p225) target = $region40
        $region39: #{tpu_custom_call.1} parent=27 // pred_region
          %229 = vsyncadd %s221, 0
          %s230 = sadd.s32 %s27, %s26
          %s231 = smul.addr %s230, 8
          %s232 = scalar_lea.hbm %s2, %s231
          %s234 = sshll.u32 %s224, 4
          %s235 = int_to_ptr.vmem [resolvable:$true] %s234
          %s236 = sshll.u32 %s232, 4
          %s237 = int_to_ptr.hbm [resolvable:$true] %s236
          %239 = dma.vmem_to_hbm [thread:$0]  %s235, 128, %s237, %s221
        $region40: #{tpu_custom_call.1} parent=27 // pred_fallthru
          _
      $region28: #{tpu_custom_call.1} parent=5 // pred_fallthru
        _
      %p240 = scmp.le.s32.totalorder 2, %s17
      // Predicated region
      $region41: #{tpu_custom_call.1} parent=5 // pred_check
        %p241 = pneg %p240
      $region42: #{tpu_custom_call.1} parent=5 // pred_check_branch
        %243 = sbr.rel (%p241) target = $region44
      $region43: #{tpu_custom_call.1} parent=5 // pred_region
        %s244 = ssub.s32 %s17, 2
        // Predicated region
        $region45: #{tpu_custom_call.1} parent=43 // pred_check
          %p245 = pneg %p114
        $region46: #{tpu_custom_call.1} parent=43 // pred_check_branch
          %247 = sbr.rel (%p245) target = $region48
        $region47: #{tpu_custom_call.1} parent=43 // pred_region
          %s248 = sand.u32 %s99, 1
          %s249 = scalar_lea.sflag [#allocation4], %s248
          %s250 = sand.u32 %s99, 1
          %s251 = smul.addr %s250, 8
          %s252 = scalar_lea.vmem [#allocation7], %s251
          %254 = dma.done %s249, 128
        $region48: #{tpu_custom_call.1} parent=43 // pred_fallthru
          _
      $region44: #{tpu_custom_call.1} parent=5 // pred_fallthru
        _
    $region6: #{tpu_custom_call.1} parent=1 // loop_footer
      %s21 = sadd.s32 1, %s17
    $region7: #{tpu_custom_call.1} parent=1 // loop_footer_branch
      %16 = sbr.rel target = $region3
    $region8: #{tpu_custom_call.1} parent=1 // loop_exit
      _
    %255 = vsyncpa [#allocation3], 1
    %s256 = scalar_lea.sflag [#allocation3], 1
    %257 = vsyncpa %s256, 1
    %258 = vsyncpa [#allocation6], 1
    %s259 = scalar_lea.sflag [#allocation6], 1
    %260 = vsyncpa %s259, 1
    %261 = vsyncpa [#allocation4], 1
    %s262 = scalar_lea.sflag [#allocation4], 1
    %263 = vsyncpa %s262, 1

</llo_original>
